<compile_context>
chip_gen: v5e
topology: v5e:2x2
jax: 0.10.0
libtpu: 0.0.40
codegen_flags: <defaults>
</compile_context>

<pallas_src>
import jax
import jax.numpy as jnp
from jax.experimental import pallas as pl
from jax.experimental.pallas import tpu as pltpu


# ---------------------------------------------------------------------------
# Glue: PyTorch-exact bicubic interpolation matrices (align_corners=False)
# ---------------------------------------------------------------------------
def _bicubic_weight_matrix(in_size: int, out_size: int) -> jnp.ndarray:
    """W (out_size, in_size) s.t. y = W @ x reproduces torch bicubic resize."""
    A = -0.75
    scale = in_size / out_size
    i = jnp.arange(out_size, dtype=jnp.float32)
    real = (i + 0.5) * scale - 0.5          # cubic: no clamp of negatives
    fl = jnp.floor(real)
    t = real - fl

    def cc1(x):  # |x| <= 1
        return ((A + 2.0) * x - (A + 3.0)) * x * x + 1.0

    def cc2(x):  # 1 < |x| < 2
        return ((A * x - 5.0 * A) * x + 8.0 * A) * x - 4.0 * A

    w = jnp.stack([cc2(t + 1.0), cc1(t), cc1(1.0 - t), cc2(2.0 - t)], axis=1)  # (out, 4)
    idx = fl.astype(jnp.int32)[:, None] + jnp.arange(-1, 3, dtype=jnp.int32)[None, :]
    idx = jnp.clip(idx, 0, in_size - 1)                                        # border clamp
    one_hot = jax.nn.one_hot(idx, in_size, dtype=jnp.float32)                  # (out, 4, in)
    return jnp.sum(w[:, :, None] * one_hot, axis=1)                            # (out, in)


# ---------------------------------------------------------------------------
# Pallas kernel: per slice b, out[b] = W @ X[b]   (small-K, wide-N MXU matmul)
# ---------------------------------------------------------------------------
def _left_matmul_kernel(w_ref, x_ref, o_ref):
    # w_ref: (M, K)   x_ref: (1, K, N)   o_ref: (1, M, N)
    o_ref[0] = jnp.dot(
        w_ref[...], x_ref[0], preferred_element_type=jnp.float32
    ).astype(o_ref.dtype)


def _batched_left_matmul(w: jnp.ndarray, x: jnp.ndarray) -> jnp.ndarray:
    """x: (B, K, N) -> (B, M, N) with out[b] = w @ x[b] on the MXU.

    The weight w is tiny (interp taps), grid-invariant, and re-used for every
    slice; the N axis (spatial*hidden, flattened) is large and lane-dense.
    Whole-slice blocks fit comfortably in VMEM even at production YOLOS sizes
    (a few MB per step), so no K/N tiling is needed.
    """
    B, K, N = x.shape
    M = w.shape[0]
    return pl.pallas_call(
        _left_matmul_kernel,
        out_shape=jax.ShapeDtypeStruct((B, M, N), x.dtype),
        grid_spec=pltpu.PrefetchScalarGridSpec(
            num_scalar_prefetch=0,
            grid=(B,),
            in_specs=[
                pl.BlockSpec((M, K), lambda b: (0, 0)),        # tiny, grid-invariant
                pl.BlockSpec((1, K, N), lambda b: (b, 0, 0)),
            ],
            out_specs=pl.BlockSpec((1, M, N), lambda b: (b, 0, 0)),
        ),
        compiler_params=pltpu.CompilerParams(
            dimension_semantics=("parallel",),          # independent slices -> both TCs on v7x
            vmem_limit_bytes=48 * 1024 * 1024,          # explicit, fits v5e/v6e/v7x
        ),
    )(w, x)


# ---------------------------------------------------------------------------
# Module-equivalent forward
# ---------------------------------------------------------------------------
class Config:
    def __init__(self, image_size, patch_size, num_detection_tokens):
        self.image_size = image_size
        self.patch_size = patch_size
        self.num_detection_tokens = num_detection_tokens


def interpolate_mid_position_embeddings(pos_embed, config, img_size=(800, 1344)):
    # pos_embed: (depth, batch, seq, hidden)
    num_det = config.num_detection_tokens
    cls_pos_embed = pos_embed[:, :, 0, :][:, None]                 # (depth, 1, batch, hidden)
    det_pos_embed = pos_embed[:, :, -num_det:, :]                  # (depth, batch, num_det, hidden)
    patch_pos_embed = pos_embed[:, :, 1:-num_det, :]               # (depth, batch, ph*pw, hidden)

    depth, batch_size, _, hidden = patch_pos_embed.shape
    ph = config.image_size[0] // config.patch_size
    pw = config.image_size[1] // config.patch_size
    height, width = img_size
    new_ph = height // config.patch_size
    new_pw = width // config.patch_size

    # Separable bicubic taps (tiny matrices), cast to the embedding dtype so a
    # bf16 pos_embed runs the MXU in bf16; accumulation stays float32 in-kernel.
    w_h = _bicubic_weight_matrix(ph, new_ph).astype(patch_pos_embed.dtype)   # (new_ph, ph)
    w_w = _bicubic_weight_matrix(pw, new_pw).astype(patch_pos_embed.dtype)   # (new_pw, pw)

    db = depth * batch_size

    # ---- height pass: contract ph, keep (pw, hidden) flat on lanes -----------
    x1 = patch_pos_embed.reshape(db, ph, pw * hidden)              # (DB, ph, pw*H)
    t1 = _batched_left_matmul(w_h, x1)                             # (DB, new_ph, pw*H)

    # ---- width pass: contract pw, keep (new_ph, hidden) flat on lanes --------
    t1 = t1.reshape(db, new_ph, pw, hidden).transpose(0, 2, 1, 3)  # (DB, pw, new_ph, H)
    x2 = t1.reshape(db, pw, new_ph * hidden)
    t2 = _batched_left_matmul(w_w, x2)                             # (DB, new_pw, new_ph*H)

    patch_new = t2.reshape(db, new_pw, new_ph, hidden).transpose(0, 2, 1, 3)
    patch_new = patch_new.reshape(depth, batch_size, new_ph * new_pw, hidden)

    # NOTE: as in the PyTorch module, the concat of cls ([:, None]) only
    # type-checks when batch == 1 (same failure mode as the reference).
    scale_pos_embed = jnp.concatenate((cls_pos_embed, patch_new, det_pos_embed), axis=2)
    return scale_pos_embed


if __name__ == "__main__":
    # Small deterministic config: patch_size=16, image_size=(32, 48) -> 2x3 patch grid,
    # 4 detection tokens, hidden=32, depth=2, batch=1 (required by the module's concat).
    config = Config(image_size=(32, 48), patch_size=16, num_detection_tokens=4)
    depth, batch, hidden = 2, 1, 32
    ph = config.image_size[0] // config.patch_size   # 2
    pw = config.image_size[1] // config.patch_size   # 3
    seq = 1 + ph * pw + config.num_detection_tokens  # 11

    key = jax.random.PRNGKey(0)
    pos_embed = jax.random.normal(key, (depth, batch, seq, hidden), dtype=jnp.float32)

    img_size = (64, 80)  # -> new patch grid 4x5
    out = interpolate_mid_position_embeddings(pos_embed, config, img_size=img_size)
    out = jax.block_until_ready(out)

    # Reference: same math via the dense kron formulation in plain JAX.
    new_ph, new_pw = img_size[0] // config.patch_size, img_size[1] // config.patch_size
    w_h = _bicubic_weight_matrix(ph, new_ph)
    w_w = _bicubic_weight_matrix(pw, new_pw)
    m = jnp.kron(w_h, w_w)                                         # (new_ph*new_pw, ph*pw)
    patch_flat = pos_embed[:, :, 1:-config.num_detection_tokens, :].reshape(
        depth * batch, ph * pw, hidden)
    ref_patch = jnp.einsum("ns,bsh->bnh", m, patch_flat)
    ref = jnp.concatenate(
        (pos_embed[:, :, 0, :][:, None],
         ref_patch.reshape(depth, batch, new_ph * new_pw, hidden),
         pos_embed[:, :, -config.num_detection_tokens:, :]),
        axis=2)

    expected_shape = (depth, batch, 1 + new_ph * new_pw + config.num_detection_tokens, hidden)
    assert out.shape == expected_shape, (out.shape, expected_shape)
    assert jnp.allclose(out, ref, atol=1e-4, rtol=1e-4)

    print("KERNEL_OK")
</pallas_src>

<mosaic_0001>
module attributes {stable_mosaic.version = 11 : i64} {
  func.func @_left_matmul_kernel(%arg0: i32, %arg1: memref<4x2xf32, #tpu.memory_space<vmem>>, %arg2: memref<1x2x96xf32, #tpu.memory_space<vmem>>, %arg3: memref<1x4x96xf32, #tpu.memory_space<vmem>>) attributes {dimension_semantics = [#tpu.dimension_semantics<parallel>], iteration_bounds = array<i64: 2>, scalar_prefetch = 0 : i64, scratch_operands = 0 : i64, tpu.core_type = #tpu.core_type<tc>, window_params = [{pipeline_mode = #tpu.pipeline_mode<synchronous>, transform_indices = @transform_0, window_bounds = array<i64: 4, 2>}, {transform_indices = @transform_1, window_bounds = array<i64: 1, 2, 96>}, {transform_indices = @transform_2, window_bounds = array<i64: 1, 4, 96>}]} {
    %c0 = arith.constant 0 : index
    %c0_0 = arith.constant 0 : index
    %0 = vector.load %arg1[%c0, %c0_0] : memref<4x2xf32, #tpu.memory_space<vmem>>, vector<4x2xf32>
    %c0_1 = arith.constant 0 : index
    %c0_2 = arith.constant 0 : index
    %c0_3 = arith.constant 0 : index
    %1 = vector.load %arg2[%c0_1, %c0_2, %c0_3] : memref<1x2x96xf32, #tpu.memory_space<vmem>>, vector<1x2x96xf32>
    %2 = vector.shape_cast %1 : vector<1x2x96xf32> to vector<2x96xf32>
    %cst = arith.constant dense<0.000000e+00> : vector<4x96xf32>
    %3 = tpu.matmul %0, %2, %cst {dimension_numbers = #tpu.dot_dimension_numbers<[1], [0], [0], [1], [0, 0, 1, 1], [], []>} : vector<4x2xf32>, vector<2x96xf32>, vector<4x96xf32> -> vector<4x96xf32>
    %c0_4 = arith.constant 0 : index
    %c0_5 = arith.constant 0 : index
    %c0_6 = arith.constant 0 : index
    %4 = vector.load %arg3[%c0_4, %c0_5, %c0_6] : memref<1x4x96xf32, #tpu.memory_space<vmem>>, vector<1x4x96xf32>
    %5 = vector.shape_cast %4 : vector<1x4x96xf32> to vector<4x96xf32>
    %6 = vector.shape_cast %3 : vector<4x96xf32> to vector<1x4x96xf32>
    tpu.vector_store %arg3[%c0_4, %c0_5, %c0_6], %6 {strides = array<i32>} : memref<1x4x96xf32, #tpu.memory_space<vmem>>, vector<1x4x96xf32>,
    return
  }
  func.func @transform_0(%arg0: i32) -> (i32, i32) {
    %c0_i32 = arith.constant 0 : i32
    %c0_i32_0 = arith.constant 0 : i32
    %c0_i32_1 = arith.constant 0 : i32
    return %c0_i32, %c0_i32_0 : i32, i32
  }
  func.func @transform_1(%arg0: i32) -> (i32, i32, i32) {
    %c0_i32 = arith.constant 0 : i32
    %c0_i32_0 = arith.constant 0 : i32
    %c0_i32_1 = arith.constant 0 : i32
    return %arg0, %c0_i32, %c0_i32_0 : i32, i32, i32
  }
  func.func @transform_2(%arg0: i32) -> (i32, i32, i32) {
    %c0_i32 = arith.constant 0 : i32
    %c0_i32_0 = arith.constant 0 : i32
    %c0_i32_1 = arith.constant 0 : i32
    return %arg0, %c0_i32, %c0_i32_0 : i32, i32, i32
  }
}

</mosaic_0001>

<llo_original>
// kernel: tpu_custom_call.1
$region0: #{tpu_custom_call.1}
  #allocation0 [shape = 'u32[]', space=smem, size = 0x4, offset = 0x4, fixed_abs, tag = 'smem constant byte address 0x4 - core index']
  #allocation1 [shape = 'u32[72,128]{1,0:T(1,128)}', space=vmem, size = 0x9000, scoped, tag = 'internal scratch']
  %s0 = inlined_call_operand.vmem [shape: f32[4,2], index: 0, kind: input, shape index: {}]
  %s1 = inlined_call_operand.vmem [shape: f32[2,2,96], index: 1, kind: input, shape index: {}]
  %s2 = inlined_call_operand.hbm [shape: f32[2,4,96], index: 2, kind: output, shape index: {}]
  %s3 = sld [smem:[#allocation0]]
  $region41: #{tpu_custom_call.1} parent=0
    _
  %s5 = ssub.s32 1, %s3
  %s6 = scalar_select 0, %s5, %s3
  $region1: #{tpu_custom_call.1} parent=0
    #allocation2 [shape = 'u8[4096]{0}', space=vmem, size = 0x1000, scoped, tag = 'output window, operand 0']
    #allocation3 [shape = 's32[2]{0}', space=sflag, size = 0x8, scoped, tag = 'scoped memory for tpu_custom_call.1']
    %7 = vsyncpa [#allocation3], 0
    %s8 = scalar_lea.sflag [#allocation3], 1
    %9 = vsyncpa %s8, 0
    loop: start=0, step=1, limit=4
    $region2: #{tpu_custom_call.1} parent=1 // loop_pre_header
      _
    $region3: #{tpu_custom_call.1} parent=1 // loop_header
      %s11 = sphi 0, %s15
      %p12 = scmp.ge.s32.totalorder %s11, 4
      %s19 = sphi 0, %s19
      %s21 = sphi 0, %s19
      %s22 = sphi 0, %s21
      %s36 = sphi 0, %s22
      %s42 = sphi 0, %s44
      %s45 = sphi 0, %s42
      %s46 = sphi 0, %s45
      %s62 = sphi 0, %s46
      %s68 = sphi 0, %s70
      %s71 = sphi 0, %s68
      %s72 = sphi 0, %s71
      %s88 = sphi 0, %s72
    $region4: #{tpu_custom_call.1} parent=1 // loop_header_branch
      %14 = sbr.rel (%p12) target = $region8
    $region5: #{tpu_custom_call.1} parent=1 // loop_body
      %s16 = ssub.s32 %s11, 1
      %s17 = ssub.s32 %s11, 2
      %s18 = sadd.s32 %s11, 1
      %s20 = sadd.s32 %s19, 1
      %p23 = scmp.eq.s32.totalorder %s11, 1
      %p24 = scmp.ne.s32.totalorder %s19, %s21
      %p25 = scmp.eq.s32.totalorder %s11, 0
      %p26 = por %p24, %p25
      %p27 = scmp.ne.s32.totalorder %s19, %s21
      %p28 = scmp.eq.s32.totalorder %s16, 1
      %p29 = por %p27, %p28
      %p30 = scmp.ne.s32.totalorder %s21, %s22
      %p31 = scmp.eq.s32.totalorder %s16, 0
      %p32 = por %p30, %p31
      %p33 = scmp.ne.s32.totalorder %s21, %s22
      %p34 = scmp.eq.s32.totalorder %s17, 1
      %p35 = por %p33, %p34
      %p37 = scmp.ne.s32.totalorder %s22, %s36
      %p38 = scmp.eq.s32.totalorder %s17, 0
      %p39 = por %p37, %p38
      %s40 = ssub.s32 %s11, %s18
      %p41 = scmp.eq.s32.totalorder %s40, 0
      %s43 = sadd.s32 %s42, 1
      %s44 = scalar_select %p41, %s42, %s43
      %p47 = pneg %p41
      %p48 = scmp.eq.s32.totalorder %s11, 1
      %p49 = por %p47, %p48
      %p50 = scmp.ne.s32.totalorder %s42, %s45
      %p51 = scmp.eq.s32.totalorder %s11, 0
      %p52 = por %p50, %p51
      %p53 = scmp.ne.s32.totalorder %s42, %s45
      %p54 = scmp.eq.s32.totalorder %s16, 1
      %p55 = por %p53, %p54
      %p56 = scmp.ne.s32.totalorder %s45, %s46
      %p57 = scmp.eq.s32.totalorder %s16, 0
      %p58 = por %p56, %p57
      %p59 = scmp.ne.s32.totalorder %s45, %s46
      %p60 = scmp.eq.s32.totalorder %s17, 1
      %p61 = por %p59, %p60
      %p63 = scmp.ne.s32.totalorder %s46, %s62
      %p64 = scmp.eq.s32.totalorder %s17, 0
      %p65 = por %p63, %p64
      %s66 = ssub.s32 %s11, %s18
      %p67 = scmp.eq.s32.totalorder %s66, 0
      %s69 = sadd.s32 %s68, 1
      %s70 = scalar_select %p67, %s68, %s69
      %p73 = pneg %p67
      %p74 = scmp.eq.s32.totalorder %s11, 1
      %p75 = por %p73, %p74
      %p76 = scmp.ne.s32.totalorder %s68, %s71
      %p77 = scmp.eq.s32.totalorder %s11, 0
      %p78 = por %p76, %p77
      %p79 = scmp.ne.s32.totalorder %s68, %s71
      %p80 = scmp.eq.s32.totalorder %s16, 1
      %p81 = por %p79, %p80
      %p82 = scmp.ne.s32.totalorder %s71, %s72
      %p83 = scmp.eq.s32.totalorder %s16, 0
      %p84 = por %p82, %p83
      %p85 = scmp.ne.s32.totalorder %s71, %s72
      %p86 = scmp.eq.s32.totalorder %s17, 1
      %p87 = por %p85, %p86
      %p89 = scmp.ne.s32.totalorder %s72, %s88
      %p90 = scmp.eq.s32.totalorder %s17, 0
      %p91 = por %p89, %p90
      %p92 = scmp.le.s32.totalorder 1, %s11
      %p93 = scmp.lt.s32.totalorder %s11, 3
      %p94 = pnand %p92, %p93
      %p95 = pneg %p94
      // Predicated region
      $region9: #{tpu_custom_call.1} parent=5 // pred_check
        _
      $region10: #{tpu_custom_call.1} parent=5 // pred_check_branch
        %97 = sbr.rel (%p94) target = $region12
      $region11: #{tpu_custom_call.1} parent=5 // pred_region
        %s98 = ssub.s32 %s11, 1
        // Predicated region
        $region13: #{tpu_custom_call.1} parent=11 // pred_check
          %p99 = pneg %p32
        $region14: #{tpu_custom_call.1} parent=11 // pred_check_branch
          %101 = sbr.rel (%p99) target = $region16
        $region15: #{tpu_custom_call.1} parent=11 // pred_region
          _
        $region16: #{tpu_custom_call.1} parent=11 // pred_fallthru
          _
      $region12: #{tpu_custom_call.1} parent=5 // pred_fallthru
        _
      %p102 = scmp.lt.s32.totalorder %s11, 2
      // Predicated region
      $region17: #{tpu_custom_call.1} parent=5 // pred_check
        %p103 = pneg %p102
      $region18: #{tpu_custom_call.1} parent=5 // pred_check_branch
        %105 = sbr.rel (%p103) target = $region20
      $region19: #{tpu_custom_call.1} parent=5 // pred_region
        // Predicated region
        $region21: #{tpu_custom_call.1} parent=19 // pred_check
          %p106 = pneg %p52
        $region22: #{tpu_custom_call.1} parent=19 // pred_check_branch
          %108 = sbr.rel (%p106) target = $region24
        $region23: #{tpu_custom_call.1} parent=19 // pred_region
          %p109 = scmp.lt.s32.totalorder %s11, 1
          %s110 = scalar_select %p109, %s11, 1
          %s111 = smul.addr %s110, 2
          %s112 = scalar_lea.vmem %s1, %s111
        $region24: #{tpu_custom_call.1} parent=19 // pred_fallthru
          _
      $region20: #{tpu_custom_call.1} parent=5 // pred_fallthru
        _
      %p113 = scmp.le.s32.totalorder 1, %s11
      %p114 = scmp.lt.s32.totalorder %s11, 3
      %p115 = pnand %p113, %p114
      %p116 = pneg %p115
      // Predicated region
      $region25: #{tpu_custom_call.1} parent=5 // pred_check
        _
      $region26: #{tpu_custom_call.1} parent=5 // pred_check_branch
        %118 = sbr.rel (%p115) target = $region28
      $region27: #{tpu_custom_call.1} parent=5 // pred_region
        %s119 = ssub.s32 %s11, 1
        %p120 = pneg %p32
        %p121 = pneg %p29
        %p122 = scmp.lt.s32.totalorder %s16, 1
        %s123 = scalar_select %p122, %s16, 1
        %s124 = smul.addr %s123, 2
        %s125 = scalar_lea.vmem %s1, %s124
        %p126 = pneg %p58
        %p127 = pneg %p55
        %p128 = pneg %p84
        %p129 = pneg %p81
        %s130 = sand.u32 %s71, 1
        %s131 = scalar_lea.sflag [#allocation3], %s130
        %s132 = sand.u32 %s71, 1
        %s133 = smul.addr %s132, 4
        %s134 = scalar_lea.vmem [#allocation2], %s133
        %p135 = scmp.lt.s32.totalorder %s16, 1
        %s136 = scalar_select %p135, %s16, 1
        %s137 = smul.addr %s136, 2
        %s138 = scalar_lea.vmem %s1, %s137
        %v139 = vld [vmem:[%s0] sm:$0xf]
        %v140 = vld [vmem:[%s138] sm:$0x3]
        %vm141 = vcmask 15360
        %v143 = vsel %vm141, %v139, 0
        %vm145 = vcmask 1041408
        %v147 = vsel %vm145, %v140, 0
        %149 = vmatpush.msra.mxu0 0.0
        %150 = vmatpush.msra.mxu0 0.0
        %151 = vmatpush.msra.mxu0 0.0
        %152 = vmatpush.msra.mxu0 0.0
        %153 = vmatpush.msra.mxu0 0.0
        %154 = vmatpush.msra.mxu0 0.0
        %155 = vmatpush.msra.mxu0 0.0
        %156 = vmatpush.msra.mxu0 0.0
        %157 = vmatpush.msra.mxu0 0.0
        %158 = vmatpush.msra.mxu0 0.0
        %159 = vmatpush.msra.mxu0 0.0
        %160 = vmatpush.msra.mxu0 0.0
        %161 = vmatpush.msra.mxu0 0.0
        %162 = vmatpush.msra.mxu0 0.0
        %163 = vmatpush.msra.mxu0 0.0
        %164 = vmatpush.msra.mxu0 %v147
        %165 = vmatmul.f32.gmra.mxu0 %v143
        %v166 = vpop.f32.mrf.mxu0
        %v167 = vadd.f32 0.0, %v166
        %168 = vdwg.mxu0
        %vm169 = vcmask 781312
        %170 = vst.msk [vmem:[%s134] sm:$0xf] %vm169, %v167
        %s171 = sand.u32 %s71, 1
        %s172 = scalar_lea.sflag [#allocation3], %s171
        %s173 = sand.u32 %s71, 1
        %s174 = smul.addr %s173, 4
        %s175 = scalar_lea.vmem [#allocation2], %s174
        // Predicated region
        $region29: #{tpu_custom_call.1} parent=27 // pred_check
          %p176 = pneg %p81
        $region30: #{tpu_custom_call.1} parent=27 // pred_check_branch
          %178 = sbr.rel (%p176) target = $region32
        $region31: #{tpu_custom_call.1} parent=27 // pred_region
          %180 = vsyncadd %s172, 0
          %s181 = smul.addr %s16, 4
          %s182 = scalar_lea.hbm %s2, %s181
          %s184 = sshll.u32 %s175, 4
          %s185 = int_to_ptr.vmem [resolvable:$true] %s184
          %s186 = sshll.u32 %s182, 4
          %s187 = int_to_ptr.hbm [resolvable:$true] %s186
          %189 = dma.vmem_to_hbm [thread:$0]  %s185, 64, %s187, %s172
        $region32: #{tpu_custom_call.1} parent=27 // pred_fallthru
          _
      $region28: #{tpu_custom_call.1} parent=5 // pred_fallthru
        _
      %p190 = scmp.le.s32.totalorder 2, %s11
      // Predicated region
      $region33: #{tpu_custom_call.1} parent=5 // pred_check
        %p191 = pneg %p190
      $region34: #{tpu_custom_call.1} parent=5 // pred_check_branch
        %193 = sbr.rel (%p191) target = $region36
      $region35: #{tpu_custom_call.1} parent=5 // pred_region
        %s194 = ssub.s32 %s11, 2
        // Predicated region
        $region37: #{tpu_custom_call.1} parent=35 // pred_check
          %p195 = pneg %p87
        $region38: #{tpu_custom_call.1} parent=35 // pred_check_branch
          %197 = sbr.rel (%p195) target = $region40
        $region39: #{tpu_custom_call.1} parent=35 // pred_region
          %s198 = sand.u32 %s72, 1
          %s199 = scalar_lea.sflag [#allocation3], %s198
          %s200 = sand.u32 %s72, 1
          %s201 = smul.addr %s200, 4
          %s202 = scalar_lea.vmem [#allocation2], %s201
          %204 = dma.done %s199, 64
        $region40: #{tpu_custom_call.1} parent=35 // pred_fallthru
          _
      $region36: #{tpu_custom_call.1} parent=5 // pred_fallthru
        _
    $region6: #{tpu_custom_call.1} parent=1 // loop_footer
      %s15 = sadd.s32 1, %s11
    $region7: #{tpu_custom_call.1} parent=1 // loop_footer_branch
      %10 = sbr.rel target = $region3
    $region8: #{tpu_custom_call.1} parent=1 // loop_exit
      _
    %205 = vsyncpa [#allocation3], 1
    %s206 = scalar_lea.sflag [#allocation3], 1
    %207 = vsyncpa %s206, 1

</llo_original>
